<compile_context>
chip_gen: v7x
topology: tpu7x:2x2x1
jax: 0.10.0
libtpu: 0.0.40
codegen_flags: <defaults>
</compile_context>

<pallas_src>
import functools

import jax
import jax.numpy as jnp
from jax.experimental import pallas as pl
from jax.experimental.pallas import tpu as pltpu


def _round_up(x, m):
    return -(-x // m) * m


def _vmem_capacity_bytes():
    """Best-effort per-core VMEM query; conservative (v7x-sized) fallback."""
    try:
        info = pltpu.get_tpu_info()
        cap = getattr(info, "vmem_capacity_bytes", None)
        if cap:
            return int(cap)
    except Exception:
        pass
    return 64 * 1024 * 1024


def _ce_kernel(n_rows, n_cols, x_ref, t_ref, w_ref, loss_ref, wsum_ref,
               m_sc, l_sc, p_sc, w_sc):
    """One (row-tile, class-chunk) step: online LSE + target/weight gather.

    x_ref:    (TB, TC) logits chunk (native dtype; cast to f32 here)
    t_ref:    (TB, 1)  int32 target class ids (padded rows -> 0)
    w_ref:    (1, TC)  f32 per-class weights (padded classes -> 0)
    loss_ref: (TB, 1)  f32 per-row weighted NLL   (written at last chunk)
    wsum_ref: (TB, 1)  f32 per-row selected weight (written at last chunk)
    m_sc / l_sc / p_sc / w_sc: (TB, 1) f32 running max / sum-exp /
                               picked logit / picked weight.
    """
    i = pl.program_id(0)            # row tile   (parallel)
    k = pl.program_id(1)            # class chunk (reduction, innermost)
    nk = pl.num_programs(1)

    @pl.when(k == 0)
    def _():
        m_sc[...] = jnp.full_like(m_sc, -jnp.inf)
        l_sc[...] = jnp.zeros_like(l_sc)
        p_sc[...] = jnp.zeros_like(p_sc)
        w_sc[...] = jnp.zeros_like(w_sc)

    x = x_ref[...].astype(jnp.float32)           # (TB, TC)
    t = t_ref[...]                               # (TB, 1) int32
    w = w_ref[...].astype(jnp.float32)           # (1, TC)

    tb, tc = x.shape

    col = jax.lax.broadcasted_iota(jnp.int32, (tb, tc), 1) + k * tc
    col_ok = col < n_cols                        # masks partial last chunk
    onehot = col == t                            # (TB, TC) bool

    # Edge-block columns may hold garbage: *select* them away (no multiply).
    x_m = jnp.where(col_ok, x, -jnp.inf)

    # Online log-sum-exp across class chunks.
    m_prev = m_sc[...]
    m_new = jnp.maximum(m_prev, jnp.max(x_m, axis=-1, keepdims=True))
    alpha = jnp.exp(m_prev - m_new)
    l_sc[...] = alpha * l_sc[...] + jnp.sum(jnp.exp(x_m - m_new),
                                            axis=-1, keepdims=True)
    m_sc[...] = m_new

    # Gather x[i, t_i] and weight[t_i] for targets that fall in this chunk
    # (a target matches exactly one chunk across the whole class loop).
    # TODO(synk): on v6e/v7x, offload the weight gather to the MXU
    # (onehot @ w^T via jnp.dot) to relieve the VALU slot.
    p_sc[...] += jnp.sum(jnp.where(onehot, x, 0.0), axis=-1, keepdims=True)
    w_sc[...] += jnp.sum(jnp.where(onehot, w, 0.0), axis=-1, keepdims=True)

    @pl.when(k == nk - 1)
    def _():
        row = jax.lax.broadcasted_iota(jnp.int32, (tb, 1), 0) + i * tb
        row_ok = row < n_rows
        nll = (m_sc[...] + jnp.log(l_sc[...])) - p_sc[...]
        wt = w_sc[...]
        # Select (not multiply) so garbage rows of a partial edge tile can
        # never leak NaN/Inf into the partial sums.
        loss_ref[...] = jnp.where(row_ok, wt * nll, 0.0)
        wsum_ref[...] = jnp.where(row_ok, wt, 0.0)


def cross_entropy_loss(logits, targets, weight=None, *, max_class_chunk=8192):
    """Pallas equivalent of F.cross_entropy(logits, targets, weight, 'mean').

    logits:  [B, C] float (f32 or bf16; cast to f32 inside the kernel)
    targets: [B]    int class indices in [0, C)
    weight:  optional [C] float per-class weights

    Note: matches torch, 0/0 -> NaN if every selected class weight is zero.
    """
    # TODO(synk): reduction='sum'/'none' would reuse the per-row partials
    # directly; only the module default reduction='mean' is wired up here.
    B, C = logits.shape
    itemsize = jnp.dtype(logits.dtype).itemsize

    vmem_cap = _vmem_capacity_bytes()
    vmem_limit = min(int(vmem_cap * 3) // 4, 96 * 1024 * 1024)
    tile_budget = vmem_cap // 2          # double-buffered logits tiles

    # --- class chunk: one full-extent block when it fits, else 128-aligned --
    if _round_up(C, 128) <= max_class_chunk:
        TC, KC = C, 1                    # full-extent last dim: legal for any C
    else:
        TC = max(128, (max_class_chunk // 128) * 128)
        KC = -(-C // TC)                 # last chunk masked in-kernel

    # --- row tile from the VMEM budget --------------------------------------
    tc_pad = _round_up(TC, 128)          # physical lane footprint of a tile
    TB = tile_budget // (2 * tc_pad * itemsize)
    TB = max(8, min((TB // 8) * 8, 1024, _round_up(B, 8)))
    R = -(-B // TB)
    B_pad = R * TB

    # Targets / weights are tiny (B and C elements) -> padding them is cheap.
    tgt = targets.astype(jnp.int32)
    if B_pad != B:
        tgt = jnp.pad(tgt, (0, B_pad - B))
    t2d = tgt.reshape(B_pad, 1)

    W_pad = KC * TC
    if weight is None:
        w_row = jnp.ones((C,), jnp.float32)
    else:
        w_row = weight.astype(jnp.float32)
    if W_pad != C:
        w_row = jnp.pad(w_row, (0, W_pad - C))
    w2d = w_row.reshape(1, W_pad)

    cost = pl.CostEstimate(
        flops=int(8 * B * C),
        transcendentals=int(B * C + B),
        bytes_accessed=int(B * C * itemsize + B_pad * 4 + W_pad * 4
                           + 2 * B_pad * 4),
    )

    loss_rows, w_rows = pl.pallas_call(
        functools.partial(_ce_kernel, B, C),
        out_shape=(jax.ShapeDtypeStruct((B_pad, 1), jnp.float32),
                   jax.ShapeDtypeStruct((B_pad, 1), jnp.float32)),
        grid_spec=pltpu.PrefetchScalarGridSpec(
            num_scalar_prefetch=0,
            grid=(R, KC),
            in_specs=[
                pl.BlockSpec((TB, TC), lambda i, k: (i, k)),   # logits chunk
                pl.BlockSpec((TB, 1), lambda i, k: (i, 0)),    # targets (per row tile)
                pl.BlockSpec((1, TC), lambda i, k: (0, k)),    # class weights
            ],
            out_specs=[
                pl.BlockSpec((TB, 1), lambda i, k: (i, 0)),    # per-row w_t * nll
                pl.BlockSpec((TB, 1), lambda i, k: (i, 0)),    # per-row w_t
            ],
            scratch_shapes=[
                pltpu.VMEM((TB, 1), jnp.float32),   # running max
                pltpu.VMEM((TB, 1), jnp.float32),   # running sum-exp
                pltpu.VMEM((TB, 1), jnp.float32),   # picked target logit
                pltpu.VMEM((TB, 1), jnp.float32),   # picked target weight
            ],
        ),
        compiler_params=pltpu.CompilerParams(
            # rows are independent (megacore-shardable on v7x); class chunks
            # are the online-LSE reduction and stay innermost / arbitrary.
            dimension_semantics=("parallel", "arbitrary"),
            vmem_limit_bytes=int(vmem_limit),
        ),
        cost_estimate=cost,
    )(logits, t2d, w2d)

    # Tiny final reduction (B floats) in the wrapper so the row axis can run
    # as per-tile parallel partials.
    return jnp.sum(loss_rows) / jnp.sum(w_rows)


def _reference(logits, targets, weight=None):
    """Pure-JAX reference matching F.cross_entropy(reduction='mean')."""
    x = logits.astype(jnp.float32)
    logp = jax.nn.log_softmax(x, axis=-1)
    nll = -jnp.take_along_axis(
        logp, targets[:, None].astype(jnp.int32), axis=-1)[:, 0]
    if weight is None:
        return jnp.mean(nll)
    w = weight.astype(jnp.float32)[targets]
    return jnp.sum(nll * w) / jnp.sum(w)


if __name__ == "__main__":
    key = jax.random.PRNGKey(0)
    k1, k2, k3, k4 = jax.random.split(key, 4)

    # Case 1: aligned shapes (batch=64, 128 intent classes), with and without
    # per-class weights -- CrossEntropyLoss(weight=...) / CrossEntropyLoss().
    B, C = 64, 128
    logits = jax.random.normal(k1, (B, C), dtype=jnp.float32)
    targets = jax.random.randint(k2, (B,), 0, C, dtype=jnp.int32)
    class_w = 0.5 + jnp.arange(C, dtype=jnp.float32) / C

    out_w = jax.block_until_ready(cross_entropy_loss(logits, targets, class_w))
    ref_w = _reference(logits, targets, class_w)
    assert jnp.allclose(out_w, ref_w, rtol=1e-5, atol=1e-6), (out_w, ref_w)

    out_u = jax.block_until_ready(cross_entropy_loss(logits, targets, None))
    ref_u = _reference(logits, targets, None)
    assert jnp.allclose(out_u, ref_u, rtol=1e-5, atol=1e-6), (out_u, ref_u)

    # Case 2: unaligned batch / class counts exercise the edge-tile masking
    # (no padding of the logits in HBM).
    B2, C2 = 37, 77
    logits2 = jax.random.normal(k3, (B2, C2), dtype=jnp.float32)
    targets2 = jax.random.randint(k4, (B2,), 0, C2, dtype=jnp.int32)
    out2 = jax.block_until_ready(cross_entropy_loss(logits2, targets2, None))
    ref2 = _reference(logits2, targets2, None)
    assert jnp.allclose(out2, ref2, rtol=1e-5, atol=1e-6), (out2, ref2)

    # Case 3: force multiple class chunks (small chunk cap) to exercise the
    # online log-sum-exp across the class grid axis + partial last chunk.
    B3, C3 = 21, 300
    logits3 = jax.random.normal(k4, (B3, C3), dtype=jnp.float32)
    targets3 = jax.random.randint(k3, (B3,), 0, C3, dtype=jnp.int32)
    class_w3 = 0.25 + jnp.arange(C3, dtype=jnp.float32) / C3
    out3 = jax.block_until_ready(
        cross_entropy_loss(logits3, targets3, class_w3, max_class_chunk=128))
    ref3 = _reference(logits3, targets3, class_w3)
    assert jnp.allclose(out3, ref3, rtol=1e-5, atol=1e-6), (out3, ref3)

    print("KERNEL_OK")
</pallas_src>

<mosaic_0001>
module attributes {stable_mosaic.version = 11 : i64} {
  func.func @_ce_kernel(%arg0: i32, %arg1: i32, %arg2: memref<64x128xf32, #tpu.memory_space<vmem>>, %arg3: memref<64x1xi32, #tpu.memory_space<vmem>>, %arg4: memref<1x128xf32, #tpu.memory_space<vmem>>, %arg5: memref<64x1xf32, #tpu.memory_space<vmem>>, %arg6: memref<64x1xf32, #tpu.memory_space<vmem>>, %arg7: memref<64x1xf32, #tpu.memory_space<vmem>>, %arg8: memref<64x1xf32, #tpu.memory_space<vmem>>, %arg9: memref<64x1xf32, #tpu.memory_space<vmem>>, %arg10: memref<64x1xf32, #tpu.memory_space<vmem>>) attributes {dimension_semantics = [#tpu.dimension_semantics<parallel>, #tpu.dimension_semantics<arbitrary>], iteration_bounds = array<i64: 1, 1>, scalar_prefetch = 0 : i64, scratch_operands = 4 : i64, tpu.core_type = #tpu.core_type<tc>, window_params = [{transform_indices = @transform_0, window_bounds = array<i64: 64, 128>}, {transform_indices = @transform_1, window_bounds = array<i64: 64, 1>}, {transform_indices = @transform_2, window_bounds = array<i64: 1, 128>}, {transform_indices = @transform_3, window_bounds = array<i64: 64, 1>}, {transform_indices = @transform_4, window_bounds = array<i64: 64, 1>}]} {
    %c0_i32 = arith.constant 0 : i32
    %0 = arith.cmpi eq, %arg1, %c0_i32 : i32
    %1 = arith.extui %0 : i1 to i32
    %c0_i32_0 = arith.constant 0 : i32
    %2 = arith.cmpi ne, %1, %c0_i32_0 : i32
    scf.if %2 {
      %cst_31 = arith.constant 0xFF800000 : f32
      %51 = vector.broadcast %cst_31 : f32 to vector<64x1xf32>
      %c0_32 = arith.constant 0 : index
      %c0_33 = arith.constant 0 : index
      %52 = vector.load %arg7[%c0_32, %c0_33] : memref<64x1xf32, #tpu.memory_space<vmem>>, vector<64x1xf32>
      tpu.vector_store %arg7[%c0_32, %c0_33], %51 {strides = array<i32>} : memref<64x1xf32, #tpu.memory_space<vmem>>, vector<64x1xf32>,
      %cst_34 = arith.constant 0.000000e+00 : f32
      %53 = vector.broadcast %cst_34 : f32 to vector<64x1xf32>
      %c0_35 = arith.constant 0 : index
      %c0_36 = arith.constant 0 : index
      %54 = vector.load %arg8[%c0_35, %c0_36] : memref<64x1xf32, #tpu.memory_space<vmem>>, vector<64x1xf32>
      tpu.vector_store %arg8[%c0_35, %c0_36], %53 {strides = array<i32>} : memref<64x1xf32, #tpu.memory_space<vmem>>, vector<64x1xf32>,
      %cst_37 = arith.constant 0.000000e+00 : f32
      %55 = vector.broadcast %cst_37 : f32 to vector<64x1xf32>
      %c0_38 = arith.constant 0 : index
      %c0_39 = arith.constant 0 : index
      %56 = vector.load %arg9[%c0_38, %c0_39] : memref<64x1xf32, #tpu.memory_space<vmem>>, vector<64x1xf32>
      tpu.vector_store %arg9[%c0_38, %c0_39], %55 {strides = array<i32>} : memref<64x1xf32, #tpu.memory_space<vmem>>, vector<64x1xf32>,
      %cst_40 = arith.constant 0.000000e+00 : f32
      %57 = vector.broadcast %cst_40 : f32 to vector<64x1xf32>
      %c0_41 = arith.constant 0 : index
      %c0_42 = arith.constant 0 : index
      %58 = vector.load %arg10[%c0_41, %c0_42] : memref<64x1xf32, #tpu.memory_space<vmem>>, vector<64x1xf32>
      tpu.vector_store %arg10[%c0_41, %c0_42], %57 {strides = array<i32>} : memref<64x1xf32, #tpu.memory_space<vmem>>, vector<64x1xf32>,
    } else {
    }
    %c0 = arith.constant 0 : index
    %c0_1 = arith.constant 0 : index
    %3 = vector.load %arg2[%c0, %c0_1] : memref<64x128xf32, #tpu.memory_space<vmem>>, vector<64x128xf32>
    %c0_2 = arith.constant 0 : index
    %c0_3 = arith.constant 0 : index
    %4 = vector.load %arg3[%c0_2, %c0_3] : memref<64x1xi32, #tpu.memory_space<vmem>>, vector<64x1xi32>
    %c0_4 = arith.constant 0 : index
    %c0_5 = arith.constant 0 : index
    %5 = vector.load %arg4[%c0_4, %c0_5] : memref<1x128xf32, #tpu.memory_space<vmem>>, vector<1x128xf32>
    %6 = tpu.iota {dimensions = array<i32: 1>} : vector<64x128xi32>
    %c128_i32 = arith.constant 128 : i32
    %7 = arith.muli %arg1, %c128_i32 : i32
    %8 = vector.broadcast %7 : i32 to vector<64x128xi32>
    %9 = arith.addi %6, %8 : vector<64x128xi32>
    %c128_i32_6 = arith.constant 128 : i32
    %10 = vector.broadcast %c128_i32_6 : i32 to vector<64x128xi32>
    %11 = arith.cmpi slt, %9, %10 : vector<64x128xi32>
    %12 = vector.broadcast %4 : vector<64x1xi32> to vector<64x128xi32>
    %13 = arith.cmpi eq, %9, %12 : vector<64x128xi32>
    %cst = arith.constant 0xFF800000 : f32
    %14 = vector.broadcast %cst : f32 to vector<64x128xf32>
    %15 = arith.select %11, %3, %14 : vector<64x128xi1>, vector<64x128xf32>
    %c0_7 = arith.constant 0 : index
    %c0_8 = arith.constant 0 : index
    %16 = vector.load %arg7[%c0_7, %c0_8] : memref<64x1xf32, #tpu.memory_space<vmem>>, vector<64x1xf32>
    %cst_9 = arith.constant dense<0xFF800000> : vector<64xf32>
    %17 = vector.multi_reduction <maximumf>, %15, %cst_9 [1] : vector<64x128xf32> to vector<64xf32>
    %18 = vector.shape_cast %17 : vector<64xf32> to vector<64x1xf32>
    %19 = arith.maximumf %16, %18 : vector<64x1xf32>
    %20 = arith.subf %16, %19 : vector<64x1xf32>
    %21 = math.exp %20 : vector<64x1xf32>
    %c0_10 = arith.constant 0 : index
    %c0_11 = arith.constant 0 : index
    %22 = vector.load %arg8[%c0_10, %c0_11] : memref<64x1xf32, #tpu.memory_space<vmem>>, vector<64x1xf32>
    %23 = arith.mulf %21, %22 : vector<64x1xf32>
    %24 = vector.broadcast %19 : vector<64x1xf32> to vector<64x128xf32>
    %25 = arith.subf %15, %24 : vector<64x128xf32>
    %26 = math.exp %25 : vector<64x128xf32>
    %cst_12 = arith.constant dense<0.000000e+00> : vector<64xf32>
    %27 = vector.multi_reduction <add>, %26, %cst_12 [1] : vector<64x128xf32> to vector<64xf32>
    %28 = vector.shape_cast %27 : vector<64xf32> to vector<64x1xf32>
    %29 = arith.addf %23, %28 : vector<64x1xf32>
    %c0_13 = arith.constant 0 : index
    %c0_14 = arith.constant 0 : index
    %30 = vector.load %arg8[%c0_13, %c0_14] : memref<64x1xf32, #tpu.memory_space<vmem>>, vector<64x1xf32>
    tpu.vector_store %arg8[%c0_13, %c0_14], %29 {strides = array<i32>} : memref<64x1xf32, #tpu.memory_space<vmem>>, vector<64x1xf32>,
    %c0_15 = arith.constant 0 : index
    %c0_16 = arith.constant 0 : index
    %31 = vector.load %arg7[%c0_15, %c0_16] : memref<64x1xf32, #tpu.memory_space<vmem>>, vector<64x1xf32>
    tpu.vector_store %arg7[%c0_15, %c0_16], %19 {strides = array<i32>} : memref<64x1xf32, #tpu.memory_space<vmem>>, vector<64x1xf32>,
    %c0_17 = arith.constant 0 : index
    %c0_18 = arith.constant 0 : index
    %32 = vector.load %arg9[%c0_17, %c0_18] : memref<64x1xf32, #tpu.memory_space<vmem>>, vector<64x1xf32>
    %cst_19 = arith.constant 0.000000e+00 : f32
    %33 = vector.broadcast %cst_19 : f32 to vector<64x128xf32>
    %34 = arith.select %13, %3, %33 : vector<64x128xi1>, vector<64x128xf32>
    %cst_20 = arith.constant dense<0.000000e+00> : vector<64xf32>
    %35 = vector.multi_reduction <add>, %34, %cst_20 [1] : vector<64x128xf32> to vector<64xf32>
    %36 = vector.shape_cast %35 : vector<64xf32> to vector<64x1xf32>
    %37 = arith.addf %32, %36 : vector<64x1xf32>
    %c0_21 = arith.constant 0 : index
    %c0_22 = arith.constant 0 : index
    %38 = vector.load %arg9[%c0_21, %c0_22] : memref<64x1xf32, #tpu.memory_space<vmem>>, vector<64x1xf32>
    tpu.vector_store %arg9[%c0_21, %c0_22], %37 {strides = array<i32>} : memref<64x1xf32, #tpu.memory_space<vmem>>, vector<64x1xf32>,
    %c0_23 = arith.constant 0 : index
    %c0_24 = arith.constant 0 : index
    %39 = vector.load %arg10[%c0_23, %c0_24] : memref<64x1xf32, #tpu.memory_space<vmem>>, vector<64x1xf32>
    %cst_25 = arith.constant 0.000000e+00 : f32
    %40 = vector.shape_cast %5 : vector<1x128xf32> to vector<1x128xf32>
    %41 = vector.broadcast %40 : vector<1x128xf32> to vector<64x128xf32>
    %42 = vector.broadcast %cst_25 : f32 to vector<64x128xf32>
    %43 = arith.select %13, %41, %42 : vector<64x128xi1>, vector<64x128xf32>
    %cst_26 = arith.constant dense<0.000000e+00> : vector<64xf32>
    %44 = vector.multi_reduction <add>, %43, %cst_26 [1] : vector<64x128xf32> to vector<64xf32>
    %45 = vector.shape_cast %44 : vector<64xf32> to vector<64x1xf32>
    %46 = arith.addf %39, %45 : vector<64x1xf32>
    %c0_27 = arith.constant 0 : index
    %c0_28 = arith.constant 0 : index
    %47 = vector.load %arg10[%c0_27, %c0_28] : memref<64x1xf32, #tpu.memory_space<vmem>>, vector<64x1xf32>
    tpu.vector_store %arg10[%c0_27, %c0_28], %46 {strides = array<i32>} : memref<64x1xf32, #tpu.memory_space<vmem>>, vector<64x1xf32>,
    %c0_i32_29 = arith.constant 0 : i32
    %48 = arith.cmpi eq, %arg1, %c0_i32_29 : i32
    %49 = arith.extui %48 : i1 to i32
    %c0_i32_30 = arith.constant 0 : i32
    %50 = arith.cmpi ne, %49, %c0_i32_30 : i32
    scf.if %50 {
      %51 = tpu.iota {dimensions = array<i32: 0>} : vector<64x1xi32>
      %c64_i32 = arith.constant 64 : i32
      %52 = arith.muli %arg0, %c64_i32 : i32
      %53 = vector.broadcast %52 : i32 to vector<64x1xi32>
      %54 = arith.addi %51, %53 : vector<64x1xi32>
      %c64_i32_31 = arith.constant 64 : i32
      %55 = vector.broadcast %c64_i32_31 : i32 to vector<64x1xi32>
      %56 = arith.cmpi slt, %54, %55 : vector<64x1xi32>
      %c0_32 = arith.constant 0 : index
      %c0_33 = arith.constant 0 : index
      %57 = vector.load %arg7[%c0_32, %c0_33] : memref<64x1xf32, #tpu.memory_space<vmem>>, vector<64x1xf32>
      %c0_34 = arith.constant 0 : index
      %c0_35 = arith.constant 0 : index
      %58 = vector.load %arg8[%c0_34, %c0_35] : memref<64x1xf32, #tpu.memory_space<vmem>>, vector<64x1xf32>
      %59 = math.log %58 : vector<64x1xf32>
      %60 = arith.addf %57, %59 : vector<64x1xf32>
      %c0_36 = arith.constant 0 : index
      %c0_37 = arith.constant 0 : index
      %61 = vector.load %arg9[%c0_36, %c0_37] : memref<64x1xf32, #tpu.memory_space<vmem>>, vector<64x1xf32>
      %62 = arith.subf %60, %61 : vector<64x1xf32>
      %c0_38 = arith.constant 0 : index
      %c0_39 = arith.constant 0 : index
      %63 = vector.load %arg10[%c0_38, %c0_39] : memref<64x1xf32, #tpu.memory_space<vmem>>, vector<64x1xf32>
      %64 = arith.mulf %63, %62 : vector<64x1xf32>
      %cst_40 = arith.constant 0.000000e+00 : f32
      %65 = vector.broadcast %cst_40 : f32 to vector<64x1xf32>
      %66 = arith.select %56, %64, %65 : vector<64x1xi1>, vector<64x1xf32>
      %c0_41 = arith.constant 0 : index
      %c0_42 = arith.constant 0 : index
      %67 = vector.load %arg5[%c0_41, %c0_42] : memref<64x1xf32, #tpu.memory_space<vmem>>, vector<64x1xf32>
      tpu.vector_store %arg5[%c0_41, %c0_42], %66 {strides = array<i32>} : memref<64x1xf32, #tpu.memory_space<vmem>>, vector<64x1xf32>,
      %cst_43 = arith.constant 0.000000e+00 : f32
      %68 = vector.broadcast %cst_43 : f32 to vector<64x1xf32>
      %69 = arith.select %56, %63, %68 : vector<64x1xi1>, vector<64x1xf32>
      %c0_44 = arith.constant 0 : index
      %c0_45 = arith.constant 0 : index
      %70 = vector.load %arg6[%c0_44, %c0_45] : memref<64x1xf32, #tpu.memory_space<vmem>>, vector<64x1xf32>
      tpu.vector_store %arg6[%c0_44, %c0_45], %69 {strides = array<i32>} : memref<64x1xf32, #tpu.memory_space<vmem>>, vector<64x1xf32>,
    } else {
    }
    return
  }
  func.func @transform_0(%arg0: i32, %arg1: i32) -> (i32, i32) {
    %c0_i32 = arith.constant 0 : i32
    return %arg0, %arg1 : i32, i32
  }
  func.func @transform_1(%arg0: i32, %arg1: i32) -> (i32, i32) {
    %c0_i32 = arith.constant 0 : i32
    %c0_i32_0 = arith.constant 0 : i32
    return %arg0, %c0_i32 : i32, i32
  }
  func.func @transform_2(%arg0: i32, %arg1: i32) -> (i32, i32) {
    %c0_i32 = arith.constant 0 : i32
    %c0_i32_0 = arith.constant 0 : i32
    return %c0_i32, %arg1 : i32, i32
  }
  func.func @transform_3(%arg0: i32, %arg1: i32) -> (i32, i32) {
    %c0_i32 = arith.constant 0 : i32
    %c0_i32_0 = arith.constant 0 : i32
    return %arg0, %c0_i32 : i32, i32
  }
  func.func @transform_4(%arg0: i32, %arg1: i32) -> (i32, i32) {
    %c0_i32 = arith.constant 0 : i32
    %c0_i32_0 = arith.constant 0 : i32
    return %arg0, %c0_i32 : i32, i32
  }
}

</mosaic_0001>

<llo_original>
// kernel: tpu_custom_call.1
$region0: #{tpu_custom_call.1}
  #allocation0 [shape = 'u32[]', space=smem, size = 0x4, offset = 0x4, fixed_abs, tag = 'smem constant byte address 0x4 - core index']
  #allocation1 [shape = 'u32[144,128]{1,0:T(1,128)}', space=vmem, size = 0x12000, scoped, tag = 'internal scratch']
  #allocation2 [shape = 'f32[64,1]{1,0:T(8,128)}', space=vmem, size = 0x8000, scoped, tag = 'scratch operand']
  #allocation3 [shape = 'f32[64,1]{1,0:T(8,128)}', space=vmem, size = 0x8000, scoped, tag = 'scratch operand']
  #allocation4 [shape = 'f32[64,1]{1,0:T(8,128)}', space=vmem, size = 0x8000, scoped, tag = 'scratch operand']
  #allocation5 [shape = 'f32[64,1]{1,0:T(8,128)}', space=vmem, size = 0x8000, scoped, tag = 'scratch operand']
  %s0 = inlined_call_operand.vmem [shape: f32[64,128], index: 0, kind: input, shape index: {}]
  %s1 = inlined_call_operand.vmem [shape: s32[64,1], index: 1, kind: input, shape index: {}]
  %s2 = inlined_call_operand.vmem [shape: f32[1,128], index: 2, kind: input, shape index: {}]
  %s3 = inlined_call_operand.vmem [shape: f32[64,1], index: 3, kind: output, shape index: {0}]
  %s4 = inlined_call_operand.vmem [shape: f32[64,1], index: 4, kind: output, shape index: {1}]
  %5 = xla_tuple %s3, %s4
  %s6 = sld [smem:[#allocation0]]
  $region38: #{tpu_custom_call.1} parent=0
    _
  %s8 = ssub.s32 1, %s6
  %s9 = scalar_select 0, %s8, %s6
  // Predicated region
  $region2: #{tpu_custom_call.1} parent=0 // pred_check
    _
  $region3: #{tpu_custom_call.1} parent=0 // pred_check_branch
    %11 = sbr.rel (0) target = $region5
  $region4: #{tpu_custom_call.1} parent=0 // pred_region
    _
  $region5: #{tpu_custom_call.1} parent=0 // pred_fallthru
    _
  // Predicated region
  $region6: #{tpu_custom_call.1} parent=0 // pred_check
    _
  $region7: #{tpu_custom_call.1} parent=0 // pred_check_branch
    %13 = sbr.rel (0) target = $region9
  $region8: #{tpu_custom_call.1} parent=0 // pred_region
    _
  $region9: #{tpu_custom_call.1} parent=0 // pred_fallthru
    _
  // Predicated region
  $region10: #{tpu_custom_call.1} parent=0 // pred_check
    _
  $region11: #{tpu_custom_call.1} parent=0 // pred_check_branch
    %15 = sbr.rel (0) target = $region13
  $region12: #{tpu_custom_call.1} parent=0 // pred_region
    _
  $region13: #{tpu_custom_call.1} parent=0 // pred_fallthru
    _
  %p16 = scmp.eq.s32.totalorder 0, 0
  // Predicated region
  $region14: #{tpu_custom_call.1} parent=0 // pred_check
    %p17 = pneg %p16
  $region15: #{tpu_custom_call.1} parent=0 // pred_check_branch
    %19 = sbr.rel (%p17) target = $region17
  $region16: #{tpu_custom_call.1} parent=0 // pred_region
    %vm20 = vcmask 7168
    %21 = vst.msk [vmem:[#allocation2] sm:$0xff] %vm20, -inf
    %22 = vst.msk [vmem:[#allocation2 + $0x8] sm:$0xff] %vm20, -inf
    %23 = vst.msk [vmem:[#allocation2 + $0x10] sm:$0xff] %vm20, -inf
    %24 = vst.msk [vmem:[#allocation2 + $0x18] sm:$0xff] %vm20, -inf
    %25 = vst.msk [vmem:[#allocation2 + $0x20] sm:$0xff] %vm20, -inf
    %26 = vst.msk [vmem:[#allocation2 + $0x28] sm:$0xff] %vm20, -inf
    %27 = vst.msk [vmem:[#allocation2 + $0x30] sm:$0xff] %vm20, -inf
    %28 = vst.msk [vmem:[#allocation2 + $0x38] sm:$0xff] %vm20, -inf
    %29 = vst.msk [vmem:[#allocation3] sm:$0xff] %vm20, 0.0
    %30 = vst.msk [vmem:[#allocation3 + $0x8] sm:$0xff] %vm20, 0.0
    %31 = vst.msk [vmem:[#allocation3 + $0x10] sm:$0xff] %vm20, 0.0
    %32 = vst.msk [vmem:[#allocation3 + $0x18] sm:$0xff] %vm20, 0.0
    %33 = vst.msk [vmem:[#allocation3 + $0x20] sm:$0xff] %vm20, 0.0
    %34 = vst.msk [vmem:[#allocation3 + $0x28] sm:$0xff] %vm20, 0.0
    %35 = vst.msk [vmem:[#allocation3 + $0x30] sm:$0xff] %vm20, 0.0
    %36 = vst.msk [vmem:[#allocation3 + $0x38] sm:$0xff] %vm20, 0.0
    %37 = vst.msk [vmem:[#allocation4] sm:$0xff] %vm20, 0.0
    %38 = vst.msk [vmem:[#allocation4 + $0x8] sm:$0xff] %vm20, 0.0
    %39 = vst.msk [vmem:[#allocation4 + $0x10] sm:$0xff] %vm20, 0.0
    %40 = vst.msk [vmem:[#allocation4 + $0x18] sm:$0xff] %vm20, 0.0
    %41 = vst.msk [vmem:[#allocation4 + $0x20] sm:$0xff] %vm20, 0.0
    %42 = vst.msk [vmem:[#allocation4 + $0x28] sm:$0xff] %vm20, 0.0
    %43 = vst.msk [vmem:[#allocation4 + $0x30] sm:$0xff] %vm20, 0.0
    %44 = vst.msk [vmem:[#allocation4 + $0x38] sm:$0xff] %vm20, 0.0
    %45 = vst.msk [vmem:[#allocation5] sm:$0xff] %vm20, 0.0
    %46 = vst.msk [vmem:[#allocation5 + $0x8] sm:$0xff] %vm20, 0.0
    %47 = vst.msk [vmem:[#allocation5 + $0x10] sm:$0xff] %vm20, 0.0
    %48 = vst.msk [vmem:[#allocation5 + $0x18] sm:$0xff] %vm20, 0.0
    %49 = vst.msk [vmem:[#allocation5 + $0x20] sm:$0xff] %vm20, 0.0
    %50 = vst.msk [vmem:[#allocation5 + $0x28] sm:$0xff] %vm20, 0.0
    %51 = vst.msk [vmem:[#allocation5 + $0x30] sm:$0xff] %vm20, 0.0
    %52 = vst.msk [vmem:[#allocation5 + $0x38] sm:$0xff] %vm20, 0.0
  $region17: #{tpu_custom_call.1} parent=0 // pred_fallthru
    _
  %v53 = vld [vmem:[%s0] sm:$0xff]
  %v54 = vld [vmem:[%s0 + $0x8] sm:$0xff]
  %v55 = vld [vmem:[%s0 + $0x10] sm:$0xff]
  %v56 = vld [vmem:[%s0 + $0x18] sm:$0xff]
  %v57 = vld [vmem:[%s0 + $0x20] sm:$0xff]
  %v58 = vld [vmem:[%s0 + $0x28] sm:$0xff]
  %v59 = vld [vmem:[%s0 + $0x30] sm:$0xff]
  %v60 = vld [vmem:[%s0 + $0x38] sm:$0xff]
  %v61 = vld [vmem:[%s1] sm:$0xff]
  %v62 = vld [vmem:[%s1 + $0x8] sm:$0xff]
  %v63 = vld [vmem:[%s1 + $0x10] sm:$0xff]
  %v64 = vld [vmem:[%s1 + $0x18] sm:$0xff]
  %v65 = vld [vmem:[%s1 + $0x20] sm:$0xff]
  %v66 = vld [vmem:[%s1 + $0x28] sm:$0xff]
  %v67 = vld [vmem:[%s1 + $0x30] sm:$0xff]
  %v68 = vld [vmem:[%s1 + $0x38] sm:$0xff]
  %v69 = vld [vmem:[%s2] sm:$0x1]
  %v70 = vlaneseq
  %v71 = vand.u32 %v70, 127
  %s72 = smul.u32 0, 128
  %v73 = vstv %s72
  %v74 = vadd.s32 %v71, %v73
  %vm75 = vcmp.lt.s32.totalorder %v74, 128
  %76 = vset.pattern.permute.xlu0 0
  %77 = vperm.xlu0 %76, %v61
  %v78 = vpop.permute.xlu0 %77
  %79 = vset.pattern.permute.xlu0 0
  %80 = vperm.xlu0 %79, %v62
  %v81 = vpop.permute.xlu0 %80
  %82 = vset.pattern.permute.xlu0 0
  %83 = vperm.xlu0 %82, %v63
  %v84 = vpop.permute.xlu0 %83
  %85 = vset.pattern.permute.xlu0 0
  %86 = vperm.xlu0 %85, %v64
  %v87 = vpop.permute.xlu0 %86
  %88 = vset.pattern.permute.xlu0 0
  %89 = vperm.xlu0 %88, %v65
  %v90 = vpop.permute.xlu0 %89
  %91 = vset.pattern.permute.xlu0 0
  %92 = vperm.xlu0 %91, %v66
  %v93 = vpop.permute.xlu0 %92
  %94 = vset.pattern.permute.xlu0 0
  %95 = vperm.xlu0 %94, %v67
  %v96 = vpop.permute.xlu0 %95
  %97 = vset.pattern.permute.xlu0 0
  %98 = vperm.xlu0 %97, %v68
  %v99 = vpop.permute.xlu0 %98
  %vm100 = vcmp.eq.s32.totalorder %v74, %v78
  %vm101 = vcmp.eq.s32.totalorder %v74, %v81
  %vm102 = vcmp.eq.s32.totalorder %v74, %v84
  %vm103 = vcmp.eq.s32.totalorder %v74, %v87
  %vm104 = vcmp.eq.s32.totalorder %v74, %v90
  %vm105 = vcmp.eq.s32.totalorder %v74, %v93
  %vm106 = vcmp.eq.s32.totalorder %v74, %v96
  %vm107 = vcmp.eq.s32.totalorder %v74, %v99
  %v108 = vsel %vm75, %v53, -inf
  %v109 = vsel %vm75, %v54, -inf
  %v110 = vsel %vm75, %v55, -inf
  %v111 = vsel %vm75, %v56, -inf
  %v112 = vsel %vm75, %v57, -inf
  %v113 = vsel %vm75, %v58, -inf
  %v114 = vsel %vm75, %v59, -inf
  %v115 = vsel %vm75, %v60, -inf
  %v116 = vld [vmem:[#allocation2] sm:$0xff]
  %v117 = vld [vmem:[#allocation2 + $0x8] sm:$0xff]
  %v118 = vld [vmem:[#allocation2 + $0x10] sm:$0xff]
  %v119 = vld [vmem:[#allocation2 + $0x18] sm:$0xff]
  %v120 = vld [vmem:[#allocation2 + $0x20] sm:$0xff]
  %v121 = vld [vmem:[#allocation2 + $0x28] sm:$0xff]
  %v122 = vld [vmem:[#allocation2 + $0x30] sm:$0xff]
  %v123 = vld [vmem:[#allocation2 + $0x38] sm:$0xff]
  %124 = vmax.xlane.f32.xlu0 %v108
  %v125 = vpop.xlane.xlu0 %124
  %126 = vmax.xlane.f32.xlu0 %v109
  %v127 = vpop.xlane.xlu0 %126
  %128 = vmax.xlane.f32.xlu0 %v110
  %v129 = vpop.xlane.xlu0 %128
  %130 = vmax.xlane.f32.xlu0 %v111
  %v131 = vpop.xlane.xlu0 %130
  %132 = vmax.xlane.f32.xlu0 %v112
  %v133 = vpop.xlane.xlu0 %132
  %134 = vmax.xlane.f32.xlu0 %v113
  %v135 = vpop.xlane.xlu0 %134
  %136 = vmax.xlane.f32.xlu0 %v114
  %v137 = vpop.xlane.xlu0 %136
  %138 = vmax.xlane.f32.xlu0 %v115
  %v139 = vpop.xlane.xlu0 %138
  %v140 = vmax.f32 %v116, %v125
  %v141 = vmax.f32 %v117, %v127
  %v142 = vmax.f32 %v118, %v129
  %v143 = vmax.f32 %v119, %v131
  %v144 = vmax.f32 %v120, %v133
  %v145 = vmax.f32 %v121, %v135
  %v146 = vmax.f32 %v122, %v137
  %v147 = vmax.f32 %v123, %v139
  %v148 = vsub.f32 %v116, %v140
  %v149 = vsub.f32 %v117, %v141
  %v150 = vsub.f32 %v118, %v142
  %v151 = vsub.f32 %v119, %v143
  %v152 = vsub.f32 %v120, %v144
  %v153 = vsub.f32 %v121, %v145
  %v154 = vsub.f32 %v122, %v146
  %v155 = vsub.f32 %v123, %v147
  %v156 = vmul.f32 %v148, 1.442695
  %v157 = vpow.pop %v156
  %v158 = vmul.f32 %v149, 1.442695
  %v159 = vpow.pop %v158
  %v160 = vmul.f32 %v150, 1.442695
  %v161 = vpow.pop %v160
  %v162 = vmul.f32 %v151, 1.442695
  %v163 = vpow.pop %v162
  %v164 = vmul.f32 %v152, 1.442695
  %v165 = vpow.pop %v164
  %v166 = vmul.f32 %v153, 1.442695
  %v167 = vpow.pop %v166
  %v168 = vmul.f32 %v154, 1.442695
  %v169 = vpow.pop %v168
  %v170 = vmul.f32 %v155, 1.442695
  %v171 = vpow.pop %v170
  %v172 = vld [vmem:[#allocation3] sm:$0xff]
  %v173 = vld [vmem:[#allocation3 + $0x8] sm:$0xff]
  %v174 = vld [vmem:[#allocation3 + $0x10] sm:$0xff]
  %v175 = vld [vmem:[#allocation3 + $0x18] sm:$0xff]
  %v176 = vld [vmem:[#allocation3 + $0x20] sm:$0xff]
  %v177 = vld [vmem:[#allocation3 + $0x28] sm:$0xff]
  %v178 = vld [vmem:[#allocation3 + $0x30] sm:$0xff]
  %v179 = vld [vmem:[#allocation3 + $0x38] sm:$0xff]
  %v180 = vmul.f32 %v157, %v172
  %v181 = vmul.f32 %v159, %v173
  %v182 = vmul.f32 %v161, %v174
  %v183 = vmul.f32 %v163, %v175
  %v184 = vmul.f32 %v165, %v176
  %v185 = vmul.f32 %v167, %v177
  %v186 = vmul.f32 %v169, %v178
  %v187 = vmul.f32 %v171, %v179
  %189 = vset.pattern.permute.xlu0 0
  %190 = vperm.xlu0 %189, %v140
  %v191 = vpop.permute.xlu0 %190
  %194 = vset.pattern.permute.xlu0 0
  %195 = vperm.xlu0 %194, %v141
  %v196 = vpop.permute.xlu0 %195
  %199 = vset.pattern.permute.xlu0 0
  %200 = vperm.xlu0 %199, %v142
  %v201 = vpop.permute.xlu0 %200
  %204 = vset.pattern.permute.xlu0 0
  %205 = vperm.xlu0 %204, %v143
  %v206 = vpop.permute.xlu0 %205
  %209 = vset.pattern.permute.xlu0 0
  %210 = vperm.xlu0 %209, %v144
  %v211 = vpop.permute.xlu0 %210
  %214 = vset.pattern.permute.xlu0 0
  %215 = vperm.xlu0 %214, %v145
  %v216 = vpop.permute.xlu0 %215
  %219 = vset.pattern.permute.xlu0 0
  %220 = vperm.xlu0 %219, %v146
  %v221 = vpop.permute.xlu0 %220
  %224 = vset.pattern.permute.xlu0 0
  %225 = vperm.xlu0 %224, %v147
  %v226 = vpop.permute.xlu0 %225
  %v228 = vsub.f32 %v108, %v191
  %v229 = vsub.f32 %v109, %v196
  %v230 = vsub.f32 %v110, %v201
  %v231 = vsub.f32 %v111, %v206
  %v232 = vsub.f32 %v112, %v211
  %v233 = vsub.f32 %v113, %v216
  %v234 = vsub.f32 %v114, %v221
  %v235 = vsub.f32 %v115, %v226
  %v236 = vmul.f32 %v228, 1.442695
  %v237 = vpow.pop %v236
  %v238 = vmul.f32 %v229, 1.442695
  %v239 = vpow.pop %v238
  %v240 = vmul.f32 %v230, 1.442695
  %v241 = vpow.pop %v240
  %v242 = vmul.f32 %v231, 1.442695
  %v243 = vpow.pop %v242
  %v244 = vmul.f32 %v232, 1.442695
  %v245 = vpow.pop %v244
  %v246 = vmul.f32 %v233, 1.442695
  %v247 = vpow.pop %v246
  %v248 = vmul.f32 %v234, 1.442695
  %v249 = vpow.pop %v248
  %v250 = vmul.f32 %v235, 1.442695
  %v251 = vpow.pop %v250
  %252 = vadd.xlane.f32.xlu0 %v237
  %v253 = vpop.xlane.xlu0 %252
  %254 = vadd.xlane.f32.xlu0 %v239
  %v255 = vpop.xlane.xlu0 %254
  %256 = vadd.xlane.f32.xlu0 %v241
  %v257 = vpop.xlane.xlu0 %256
  %258 = vadd.xlane.f32.xlu0 %v243
  %v259 = vpop.xlane.xlu0 %258
  %260 = vadd.xlane.f32.xlu0 %v245
  %v261 = vpop.xlane.xlu0 %260
  %262 = vadd.xlane.f32.xlu0 %v247
  %v263 = vpop.xlane.xlu0 %262
  %264 = vadd.xlane.f32.xlu0 %v249
  %v265 = vpop.xlane.xlu0 %264
  %266 = vadd.xlane.f32.xlu0 %v251
  %v267 = vpop.xlane.xlu0 %266
  %v268 = vadd.f32 %v180, %v253
  %v269 = vadd.f32 %v181, %v255
  %v270 = vadd.f32 %v182, %v257
  %v271 = vadd.f32 %v183, %v259
  %v272 = vadd.f32 %v184, %v261
  %v273 = vadd.f32 %v185, %v263
  %v274 = vadd.f32 %v186, %v265
  %v275 = vadd.f32 %v187, %v267
  %vm276 = vcmask 7168
  %277 = vst.msk [vmem:[#allocation3] sm:$0xff] %vm276, %v268
  %278 = vst.msk [vmem:[#allocation3 + $0x8] sm:$0xff] %vm276, %v269
  %279 = vst.msk [vmem:[#allocation3 + $0x10] sm:$0xff] %vm276, %v270
  %280 = vst.msk [vmem:[#allocation3 + $0x18] sm:$0xff] %vm276, %v271
  %281 = vst.msk [vmem:[#allocation3 + $0x20] sm:$0xff] %vm276, %v272
  %282 = vst.msk [vmem:[#allocation3 + $0x28] sm:$0xff] %vm276, %v273
  %283 = vst.msk [vmem:[#allocation3 + $0x30] sm:$0xff] %vm276, %v274
  %284 = vst.msk [vmem:[#allocation3 + $0x38] sm:$0xff] %vm276, %v275
  %285 = vst.msk [vmem:[#allocation2] sm:$0xff] %vm276, %v140
  %286 = vst.msk [vmem:[#allocation2 + $0x8] sm:$0xff] %vm276, %v141
  %287 = vst.msk [vmem:[#allocation2 + $0x10] sm:$0xff] %vm276, %v142
  %288 = vst.msk [vmem:[#allocation2 + $0x18] sm:$0xff] %vm276, %v143
  %289 = vst.msk [vmem:[#allocation2 + $0x20] sm:$0xff] %vm276, %v144
  %290 = vst.msk [vmem:[#allocation2 + $0x28] sm:$0xff] %vm276, %v145
  %291 = vst.msk [vmem:[#allocation2 + $0x30] sm:$0xff] %vm276, %v146
  %292 = vst.msk [vmem:[#allocation2 + $0x38] sm:$0xff] %vm276, %v147
  %v293 = vld [vmem:[#allocation4] sm:$0xff]
  %v294 = vld [vmem:[#allocation4 + $0x8] sm:$0xff]
  %v295 = vld [vmem:[#allocation4 + $0x10] sm:$0xff]
  %v296 = vld [vmem:[#allocation4 + $0x18] sm:$0xff]
  %v297 = vld [vmem:[#allocation4 + $0x20] sm:$0xff]
  %v298 = vld [vmem:[#allocation4 + $0x28] sm:$0xff]
  %v299 = vld [vmem:[#allocation4 + $0x30] sm:$0xff]
  %v300 = vld [vmem:[#allocation4 + $0x38] sm:$0xff]
  %v301 = vsel %vm100, %v53, 0.0
  %v302 = vsel %vm101, %v54, 0.0
  %v303 = vsel %vm102, %v55, 0.0
  %v304 = vsel %vm103, %v56, 0.0
  %v305 = vsel %vm104, %v57, 0.0
  %v306 = vsel %vm105, %v58, 0.0
  %v307 = vsel %vm106, %v59, 0.0
  %v308 = vsel %vm107, %v60, 0.0
  %309 = vadd.xlane.f32.xlu0 %v301
  %v310 = vpop.xlane.xlu0 %309
  %311 = vadd.xlane.f32.xlu0 %v302
  %v312 = vpop.xlane.xlu0 %311
  %313 = vadd.xlane.f32.xlu0 %v303
  %v314 = vpop.xlane.xlu0 %313
  %315 = vadd.xlane.f32.xlu0 %v304
  %v316 = vpop.xlane.xlu0 %315
  %317 = vadd.xlane.f32.xlu0 %v305
  %v318 = vpop.xlane.xlu0 %317
  %319 = vadd.xlane.f32.xlu0 %v306
  %v320 = vpop.xlane.xlu0 %319
  %321 = vadd.xlane.f32.xlu0 %v307
  %v322 = vpop.xlane.xlu0 %321
  %323 = vadd.xlane.f32.xlu0 %v308
  %v324 = vpop.xlane.xlu0 %323
  %v325 = vadd.f32 %v293, %v310
  %v326 = vadd.f32 %v294, %v312
  %v327 = vadd.f32 %v295, %v314
  %v328 = vadd.f32 %v296, %v316
  %v329 = vadd.f32 %v297, %v318
  %v330 = vadd.f32 %v298, %v320
  %v331 = vadd.f32 %v299, %v322
  %v332 = vadd.f32 %v300, %v324
  %333 = vst.msk [vmem:[#allocation4] sm:$0xff] %vm276, %v325
  %334 = vst.msk [vmem:[#allocation4 + $0x8] sm:$0xff] %vm276, %v326
  %335 = vst.msk [vmem:[#allocation4 + $0x10] sm:$0xff] %vm276, %v327
  %336 = vst.msk [vmem:[#allocation4 + $0x18] sm:$0xff] %vm276, %v328
  %337 = vst.msk [vmem:[#allocation4 + $0x20] sm:$0xff] %vm276, %v329
  %338 = vst.msk [vmem:[#allocation4 + $0x28] sm:$0xff] %vm276, %v330
  %339 = vst.msk [vmem:[#allocation4 + $0x30] sm:$0xff] %vm276, %v331
  %340 = vst.msk [vmem:[#allocation4 + $0x38] sm:$0xff] %vm276, %v332
  %v341 = vld [vmem:[#allocation5] sm:$0xff]
  %v342 = vld [vmem:[#allocation5 + $0x8] sm:$0xff]
  %v343 = vld [vmem:[#allocation5 + $0x10] sm:$0xff]
  %v344 = vld [vmem:[#allocation5 + $0x18] sm:$0xff]
  %v345 = vld [vmem:[#allocation5 + $0x20] sm:$0xff]
  %v346 = vld [vmem:[#allocation5 + $0x28] sm:$0xff]
  %v347 = vld [vmem:[#allocation5 + $0x30] sm:$0xff]
  %v348 = vld [vmem:[#allocation5 + $0x38] sm:$0xff]
  %v350 = vlaneseq
  %v351 = vshrl.u32 %v350, 7
  %v352 = vsub.s32 0, %v351
  %v353 = vrot.slane %v69, %v352
  %v355 = vsel %vm100, %v353, 0.0
  %v356 = vsel %vm101, %v353, 0.0
  %v357 = vsel %vm102, %v353, 0.0
  %v358 = vsel %vm103, %v353, 0.0
  %v359 = vsel %vm104, %v353, 0.0
  %v360 = vsel %vm105, %v353, 0.0
  %v361 = vsel %vm106, %v353, 0.0
  %v362 = vsel %vm107, %v353, 0.0
  %363 = vadd.xlane.f32.xlu0 %v355
  %v364 = vpop.xlane.xlu0 %363
  %365 = vadd.xlane.f32.xlu0 %v356
  %v366 = vpop.xlane.xlu0 %365
  %367 = vadd.xlane.f32.xlu0 %v357
  %v368 = vpop.xlane.xlu0 %367
  %369 = vadd.xlane.f32.xlu0 %v358
  %v370 = vpop.xlane.xlu0 %369
  %371 = vadd.xlane.f32.xlu0 %v359
  %v372 = vpop.xlane.xlu0 %371
  %373 = vadd.xlane.f32.xlu0 %v360
  %v374 = vpop.xlane.xlu0 %373
  %375 = vadd.xlane.f32.xlu0 %v361
  %v376 = vpop.xlane.xlu0 %375
  %377 = vadd.xlane.f32.xlu0 %v362
  %v378 = vpop.xlane.xlu0 %377
  %v379 = vadd.f32 %v341, %v364
  %v380 = vadd.f32 %v342, %v366
  %v381 = vadd.f32 %v343, %v368
  %v382 = vadd.f32 %v344, %v370
  %v383 = vadd.f32 %v345, %v372
  %v384 = vadd.f32 %v346, %v374
  %v385 = vadd.f32 %v347, %v376
  %v386 = vadd.f32 %v348, %v378
  %387 = vst.msk [vmem:[#allocation5] sm:$0xff] %vm276, %v379
  %388 = vst.msk [vmem:[#allocation5 + $0x8] sm:$0xff] %vm276, %v380
  %389 = vst.msk [vmem:[#allocation5 + $0x10] sm:$0xff] %vm276, %v381
  %390 = vst.msk [vmem:[#allocation5 + $0x18] sm:$0xff] %vm276, %v382
  %391 = vst.msk [vmem:[#allocation5 + $0x20] sm:$0xff] %vm276, %v383
  %392 = vst.msk [vmem:[#allocation5 + $0x28] sm:$0xff] %vm276, %v384
  %393 = vst.msk [vmem:[#allocation5 + $0x30] sm:$0xff] %vm276, %v385
  %394 = vst.msk [vmem:[#allocation5 + $0x38] sm:$0xff] %vm276, %v386
  // Predicated region
  $region18: #{tpu_custom_call.1} parent=0 // pred_check
    %p395 = pneg %p16
  $region19: #{tpu_custom_call.1} parent=0 // pred_check_branch
    %397 = sbr.rel (%p395) target = $region21
  $region20: #{tpu_custom_call.1} parent=0 // pred_region
    %v398 = vlaneseq
    %v399 = vshrl.u32 %v398, 7
    %v400 = vadd.s32 %v399, 8
    %v401 = vadd.s32 %v399, 16
    %v402 = vadd.s32 %v399, 24
    %v403 = vadd.s32 %v399, 32
    %v404 = vadd.s32 %v399, 40
    %v405 = vadd.s32 %v399, 48
    %v406 = vadd.s32 %v399, 56
    %s407 = smul.u32 0, 64
    %v408 = vstv %s407
    %v409 = vadd.s32 %v399, %v408
    %v410 = vadd.s32 %v400, %v408
    %v411 = vadd.s32 %v401, %v408
    %v412 = vadd.s32 %v402, %v408
    %v413 = vadd.s32 %v403, %v408
    %v414 = vadd.s32 %v404, %v408
    %v415 = vadd.s32 %v405, %v408
    %v416 = vadd.s32 %v406, %v408
    %vm417 = vcmp.lt.s32.totalorder %v409, 64
    %vm418 = vcmp.lt.s32.totalorder %v410, 64
    %vm419 = vcmp.lt.s32.totalorder %v411, 64
    %vm420 = vcmp.lt.s32.totalorder %v412, 64
    %vm421 = vcmp.lt.s32.totalorder %v413, 64
    %vm422 = vcmp.lt.s32.totalorder %v414, 64
    %vm423 = vcmp.lt.s32.totalorder %v415, 64
    %vm424 = vcmp.lt.s32.totalorder %v416, 64
    %v425 = vld [vmem:[#allocation2] sm:$0xff]
    %v426 = vld [vmem:[#allocation2 + $0x8] sm:$0xff]
    %v427 = vld [vmem:[#allocation2 + $0x10] sm:$0xff]
    %v428 = vld [vmem:[#allocation2 + $0x18] sm:$0xff]
    %v429 = vld [vmem:[#allocation2 + $0x20] sm:$0xff]
    %v430 = vld [vmem:[#allocation2 + $0x28] sm:$0xff]
    %v431 = vld [vmem:[#allocation2 + $0x30] sm:$0xff]
    %v432 = vld [vmem:[#allocation2 + $0x38] sm:$0xff]
    %v433 = vld [vmem:[#allocation3] sm:$0xff]
    %v434 = vld [vmem:[#allocation3 + $0x8] sm:$0xff]
    %v435 = vld [vmem:[#allocation3 + $0x10] sm:$0xff]
    %v436 = vld [vmem:[#allocation3 + $0x18] sm:$0xff]
    %v437 = vld [vmem:[#allocation3 + $0x20] sm:$0xff]
    %v438 = vld [vmem:[#allocation3 + $0x28] sm:$0xff]
    %v439 = vld [vmem:[#allocation3 + $0x30] sm:$0xff]
    %v440 = vld [vmem:[#allocation3 + $0x38] sm:$0xff]
    %v441 = vlog2.pop %v433
    %v442 = vmul.f32 %v441, 0.6931472
    %v443 = vlog2.pop %v434
    %v444 = vmul.f32 %v443, 0.6931472
    %v445 = vlog2.pop %v435
    %v446 = vmul.f32 %v445, 0.6931472
    %v447 = vlog2.pop %v436
    %v448 = vmul.f32 %v447, 0.6931472
    %v449 = vlog2.pop %v437
    %v450 = vmul.f32 %v449, 0.6931472
    %v451 = vlog2.pop %v438
    %v452 = vmul.f32 %v451, 0.6931472
    %v453 = vlog2.pop %v439
    %v454 = vmul.f32 %v453, 0.6931472
    %v455 = vlog2.pop %v440
    %v456 = vmul.f32 %v455, 0.6931472
    %v457 = vadd.f32 %v425, %v442
    %v458 = vadd.f32 %v426, %v444
    %v459 = vadd.f32 %v427, %v446
    %v460 = vadd.f32 %v428, %v448
    %v461 = vadd.f32 %v429, %v450
    %v462 = vadd.f32 %v430, %v452
    %v463 = vadd.f32 %v431, %v454
    %v464 = vadd.f32 %v432, %v456
    %v465 = vld [vmem:[#allocation4] sm:$0xff]
    %v466 = vld [vmem:[#allocation4 + $0x8] sm:$0xff]
    %v467 = vld [vmem:[#allocation4 + $0x10] sm:$0xff]
    %v468 = vld [vmem:[#allocation4 + $0x18] sm:$0xff]
    %v469 = vld [vmem:[#allocation4 + $0x20] sm:$0xff]
    %v470 = vld [vmem:[#allocation4 + $0x28] sm:$0xff]
    %v471 = vld [vmem:[#allocation4 + $0x30] sm:$0xff]
    %v472 = vld [vmem:[#allocation4 + $0x38] sm:$0xff]
    %v473 = vsub.f32 %v457, %v465
    %v474 = vsub.f32 %v458, %v466
    %v475 = vsub.f32 %v459, %v467
    %v476 = vsub.f32 %v460, %v468
    %v477 = vsub.f32 %v461, %v469
    %v478 = vsub.f32 %v462, %v470
    %v479 = vsub.f32 %v463, %v471
    %v480 = vsub.f32 %v464, %v472
    %v481 = vld [vmem:[#allocation5] sm:$0xff]
    %v482 = vld [vmem:[#allocation5 + $0x8] sm:$0xff]
    %v483 = vld [vmem:[#allocation5 + $0x10] sm:$0xff]
    %v484 = vld [vmem:[#allocation5 + $0x18] sm:$0xff]
    %v485 = vld [vmem:[#allocation5 + $0x20] sm:$0xff]
    %v486 = vld [vmem:[#allocation5 + $0x28] sm:$0xff]
    %v487 = vld [vmem:[#allocation5 + $0x30] sm:$0xff]
    %v488 = vld [vmem:[#allocation5 + $0x38] sm:$0xff]
    %v489 = vmul.f32 %v481, %v473
    %v490 = vmul.f32 %v482, %v474
    %v491 = vmul.f32 %v483, %v475
    %v492 = vmul.f32 %v484, %v476
    %v493 = vmul.f32 %v485, %v477
    %v494 = vmul.f32 %v486, %v478
    %v495 = vmul.f32 %v487, %v479
    %v496 = vmul.f32 %v488, %v480
    %v497 = vsel %vm417, %v489, 0.0
    %v498 = vsel %vm418, %v490, 0.0
    %v499 = vsel %vm419, %v491, 0.0
    %v500 = vsel %vm420, %v492, 0.0
    %v501 = vsel %vm421, %v493, 0.0
    %v502 = vsel %vm422, %v494, 0.0
    %v503 = vsel %vm423, %v495, 0.0
    %v504 = vsel %vm424, %v496, 0.0
    %505 = vst.msk [vmem:[%s3] sm:$0xff] %vm276, %v497
    %506 = vst.msk [vmem:[%s3 + $0x8] sm:$0xff] %vm276, %v498
    %507 = vst.msk [vmem:[%s3 + $0x10] sm:$0xff] %vm276, %v499
    %508 = vst.msk [vmem:[%s3 + $0x18] sm:$0xff] %vm276, %v500
    %509 = vst.msk [vmem:[%s3 + $0x20] sm:$0xff] %vm276, %v501
    %510 = vst.msk [vmem:[%s3 + $0x28] sm:$0xff] %vm276, %v502
    %511 = vst.msk [vmem:[%s3 + $0x30] sm:$0xff] %vm276, %v503
    %512 = vst.msk [vmem:[%s3 + $0x38] sm:$0xff] %vm276, %v504
    %v513 = vsel %vm417, %v481, 0.0
    %v514 = vsel %vm418, %v482, 0.0
    %v515 = vsel %vm419, %v483, 0.0
    %v516 = vsel %vm420, %v484, 0.0
    %v517 = vsel %vm421, %v485, 0.0
    %v518 = vsel %vm422, %v486, 0.0
    %v519 = vsel %vm423, %v487, 0.0
    %v520 = vsel %vm424, %v488, 0.0
    %521 = vst.msk [vmem:[%s4] sm:$0xff] %vm276, %v513
    %522 = vst.msk [vmem:[%s4 + $0x8] sm:$0xff] %vm276, %v514
    %523 = vst.msk [vmem:[%s4 + $0x10] sm:$0xff] %vm276, %v515
    %524 = vst.msk [vmem:[%s4 + $0x18] sm:$0xff] %vm276, %v516
    %525 = vst.msk [vmem:[%s4 + $0x20] sm:$0xff] %vm276, %v517
    %526 = vst.msk [vmem:[%s4 + $0x28] sm:$0xff] %vm276, %v518
    %527 = vst.msk [vmem:[%s4 + $0x30] sm:$0xff] %vm276, %v519
    %528 = vst.msk [vmem:[%s4 + $0x38] sm:$0xff] %vm276, %v520
  $region21: #{tpu_custom_call.1} parent=0 // pred_fallthru
    _
  // Predicated region
  $region22: #{tpu_custom_call.1} parent=0 // pred_check
    _
  $region23: #{tpu_custom_call.1} parent=0 // pred_check_branch
    %530 = sbr.rel (0) target = $region25
  $region24: #{tpu_custom_call.1} parent=0 // pred_region
    _
  $region25: #{tpu_custom_call.1} parent=0 // pred_fallthru
    _
  // Predicated region
  $region26: #{tpu_custom_call.1} parent=0 // pred_check
    _
  $region27: #{tpu_custom_call.1} parent=0 // pred_check_branch
    %532 = sbr.rel (0) target = $region29
  $region28: #{tpu_custom_call.1} parent=0 // pred_region
    _
  $region29: #{tpu_custom_call.1} parent=0 // pred_fallthru
    _
  // Predicated region
  $region30: #{tpu_custom_call.1} parent=0 // pred_check
    _
  $region31: #{tpu_custom_call.1} parent=0 // pred_check_branch
    %534 = sbr.rel (0) target = $region33
  $region32: #{tpu_custom_call.1} parent=0 // pred_region
    _
  $region33: #{tpu_custom_call.1} parent=0 // pred_fallthru
    _
  // Predicated region
  $region34: #{tpu_custom_call.1} parent=0 // pred_check
    _
  $region35: #{tpu_custom_call.1} parent=0 // pred_check_branch
    %536 = sbr.rel (0) target = $region37
  $region36: #{tpu_custom_call.1} parent=0 // pred_region
    _
  $region37: #{tpu_custom_call.1} parent=0 // pred_fallthru
    _

</llo_original>
